<compile_context>
chip_gen: v7x
topology: tpu7x:2x2x1
jax: 0.10.0
libtpu: 0.0.40
codegen_flags: <defaults>
</compile_context>

<pallas_src>
import jax
import jax.numpy as jnp
from jax.experimental import pallas as pl
from jax.experimental.pallas import tpu as pltpu


def _round_up(x: int, m: int) -> int:
    return ((x + m - 1) // m) * m


def mlp_kernel(x_ref, w1_ref, b1_ref, w2_ref, b2_ref, w3_ref, b3_ref, o_ref):
    """Fused 3-layer MLP on one (TILE_B, IN) batch tile, batch-in-lanes.

    x_ref  : (TILE_B, IN)  input tile (caller dtype; cast in-kernel)
    w1_ref : (H, IN)       fc1.weight (PyTorch layout), compute dtype
    b1_ref : (H, 1)        fc1.bias, f32
    w2_ref : (H, H)        fc2.weight (PyTorch layout), f32
    b2_ref : (H, 1)        fc2.bias, f32
    w3_ref : (H, 1)        fc3.weight as a column, f32
    b3_ref : (1,) in SMEM  fc3.bias scalar, f32
    o_ref  : (1, TILE_B)   lane-dense output row, f32
    """
    h = w2_ref.shape[0]

    # ---- fc1 on the MXU (the only matmul): (H, IN) . (TILE_B, IN)^T -------
    # Produces h1 already transposed (hidden on sublanes, batch on lanes).
    x = x_ref[...].astype(w1_ref.dtype)          # bf16 cast in VMEM, no HBM pass
    h1 = jax.lax.dot_general(
        w1_ref[...], x,
        dimension_numbers=(((1,), (1,)), ((), ())),
        preferred_element_type=jnp.float32)
    h1 = jnp.maximum(h1 + b1_ref[...], 0.0)      # (H, TILE_B) f32

    # ---- fc2 on the VPU: H sublane-broadcast multiply-adds ---------------
    # acc[j, b] = sum_k w2[j, k] * h1[k, b]
    w2 = w2_ref[...]                             # (H, H) f32
    acc = h1[0:1, :] * w2[:, 0:1]                # (1,T)*(H,1) -> (H,T)
    for k in range(1, h):                        # h == 8, fully unrolled
        acc = acc + h1[k:k + 1, :] * w2[:, k:k + 1]
    h2 = jnp.maximum(acc + b2_ref[...], 0.0)     # (H, TILE_B) f32

    # ---- fc3 on VPU + XLU: per-sublane scale, then cross-sublane sum -----
    y = jnp.sum(h2 * w3_ref[...], axis=0, keepdims=True)   # (1, TILE_B)
    o_ref[...] = (y + b3_ref[0]).astype(o_ref.dtype)


def action_value_network(x, params, *, block_rows=4096,
                         compute_dtype=jnp.bfloat16):
    """x: (B, state_size + num_actions) -> (B, 1) float32.

    params are in PyTorch nn.Linear layout:
      w1 (H, IN), b1 (H,), w2 (H, H), b2 (H,), w3 (1, H), b3 (1,)
    """
    w1, b1, w2, b2, w3, b3 = params
    B, in_dim = x.shape
    hidden = w1.shape[0]

    # ---- batch tiling ------------------------------------------------------
    if B <= 256:
        # Single grid step; blocks equal the full array dims (no (8,128)
        # divisibility requirement, no padding anywhere).
        tile_b = B
    else:
        # Lane-dense tiles: multiple of 128.  Cap at ceil(B/2) so there are
        # always >= 2 grid steps and the "parallel" axis can use both v7x TCs.
        tile_b = min(_round_up(block_rows, 128),
                     _round_up(pl.cdiv(B, 2), 128))
    grid = (pl.cdiv(B, tile_b),)   # tail block (if any) is masked by Pallas

    # ---- one-time, tiny weight/bias reshapes (total < 2 KB) ---------------
    w1c = w1.astype(compute_dtype)                      # (H, IN)  MXU operand
    b1c = b1.reshape(hidden, 1).astype(jnp.float32)
    w2c = w2.astype(jnp.float32)                        # (H, H)   VPU math
    b2c = b2.reshape(hidden, 1).astype(jnp.float32)
    w3c = w3.reshape(hidden, 1).astype(jnp.float32)     # fc3 weight as column
    b3s = b3.reshape(1).astype(jnp.float32)             # scalar -> SMEM

    out = pl.pallas_call(
        mlp_kernel,
        out_shape=jax.ShapeDtypeStruct((1, B), jnp.float32),
        grid=grid,
        in_specs=[
            # Streamed batch tiles (double-buffered by the Pallas pipeline);
            # IN=45 stays unpadded in HBM, padding to 128 lanes happens only
            # inside VMEM.
            pl.BlockSpec((tile_b, in_dim), lambda i: (i, 0)),
            # Weights/biases: constant block index -> fetched once and kept
            # VMEM-resident across all grid steps.
            pl.BlockSpec((hidden, in_dim), lambda i: (0, 0)),
            pl.BlockSpec((hidden, 1), lambda i: (0, 0)),
            pl.BlockSpec((hidden, hidden), lambda i: (0, 0)),
            pl.BlockSpec((hidden, 1), lambda i: (0, 0)),
            pl.BlockSpec((hidden, 1), lambda i: (0, 0)),
            # fc3 bias: single scalar lives in SMEM.
            pl.BlockSpec(memory_space=pltpu.MemorySpace.SMEM),
        ],
        out_specs=pl.BlockSpec((1, tile_b), lambda i: (0, i)),
        compiler_params=pltpu.CompilerParams(
            dimension_semantics=("parallel",)),
    )(x, w1c, b1c, w2c, b2c, w3c, b3s)

    # Lane-dense (1, B) slab -> (B, 1).
    return out.reshape(B, 1)


def init_params(key, in_dim, hidden_size):
    """Deterministic init mirroring nn.Linear (PyTorch (out, in) layout)."""
    k1, k2, k3, k4, k5, k6 = jax.random.split(key, 6)

    def uniform(k, shape, fan_in):
        bound = 1.0 / jnp.sqrt(fan_in)
        return jax.random.uniform(k, shape, jnp.float32, -bound, bound)

    w1 = uniform(k1, (hidden_size, in_dim), in_dim)             # fc1.weight
    b1 = uniform(k2, (hidden_size,), in_dim)                    # fc1.bias
    w2 = uniform(k3, (hidden_size, hidden_size), hidden_size)   # fc2.weight
    b2 = uniform(k4, (hidden_size,), hidden_size)               # fc2.bias
    w3 = uniform(k5, (1, hidden_size), hidden_size)             # fc3.weight
    b3 = uniform(k6, (1,), hidden_size)                         # fc3.bias
    return (w1, b1, w2, b2, w3, b3)


if __name__ == "__main__":
    # Braess network: 4 nodes, 5 edges; 10 players.
    num_nodes = 4
    num_players = 10
    num_actions = 5                        # graph.num_edges()
    state_size = num_nodes * num_players   # 40
    in_dim = state_size + num_actions      # 45
    hidden_size = 8
    batch = 2

    key = jax.random.PRNGKey(0)
    k_params, k_x, k_x2 = jax.random.split(key, 3)
    params = init_params(k_params, in_dim, hidden_size)

    def reference(x, p):
        w1, b1, w2, b2, w3, b3 = p
        h = jnp.maximum(x @ w1.T + b1, 0.0)
        h = jnp.maximum(h @ w2.T + b2, 0.0)
        return h @ w3.T + b3

    # Small batch (the module's native use-case): one grid step, exact f32 path.
    x = jax.random.normal(k_x, (batch, in_dim), jnp.float32)
    out = jax.block_until_ready(
        action_value_network(x, params, compute_dtype=jnp.float32))
    ref = reference(x, params)
    assert out.shape == (batch, 1)
    assert jnp.allclose(out, ref, atol=1e-5, rtol=1e-5)

    # Larger, non-multiple batch: 2 grid steps + masked tail block, default
    # bf16 MXU operands (f32 accumulation) -> slightly looser tolerance.
    x2 = jax.random.normal(k_x2, (300, in_dim), jnp.float32)
    out2 = jax.block_until_ready(action_value_network(x2, params))
    ref2 = reference(x2, params)
    assert out2.shape == (300, 1)
    assert jnp.allclose(out2, ref2, atol=2e-2, rtol=2e-2)

    print("KERNEL_OK")
</pallas_src>

<mosaic_0001>
module attributes {stable_mosaic.version = 11 : i64} {
  func.func @mlp_kernel(%arg0: i32, %arg1: memref<2x45xf32, #tpu.memory_space<vmem>>, %arg2: memref<8x45xf32, #tpu.memory_space<vmem>>, %arg3: memref<8x1xf32, #tpu.memory_space<vmem>>, %arg4: memref<8x8xf32, #tpu.memory_space<vmem>>, %arg5: memref<8x1xf32, #tpu.memory_space<vmem>>, %arg6: memref<8x1xf32, #tpu.memory_space<vmem>>, %arg7: memref<1xf32, #tpu.memory_space<smem>>, %arg8: memref<1x2xf32, #tpu.memory_space<vmem>>) attributes {dimension_semantics = [#tpu.dimension_semantics<parallel>], iteration_bounds = array<i64: 1>, scalar_prefetch = 0 : i64, scratch_operands = 0 : i64, tpu.core_type = #tpu.core_type<tc>, window_params = [{transform_indices = @transform_0, window_bounds = array<i64: 2, 45>}, {pipeline_mode = #tpu.pipeline_mode<synchronous>, transform_indices = @transform_1, window_bounds = array<i64: 8, 45>}, {pipeline_mode = #tpu.pipeline_mode<synchronous>, transform_indices = @transform_2, window_bounds = array<i64: 8, 1>}, {pipeline_mode = #tpu.pipeline_mode<synchronous>, transform_indices = @transform_3, window_bounds = array<i64: 8, 8>}, {pipeline_mode = #tpu.pipeline_mode<synchronous>, transform_indices = @transform_4, window_bounds = array<i64: 8, 1>}, {pipeline_mode = #tpu.pipeline_mode<synchronous>, transform_indices = @transform_5, window_bounds = array<i64: 8, 1>}, {transform_indices = @transform_6, window_bounds = array<i64: 1>}, {transform_indices = @transform_7, window_bounds = array<i64: 1, 2>}]} {
    %c0 = arith.constant 0 : index
    %c0_0 = arith.constant 0 : index
    %0 = vector.load %arg1[%c0, %c0_0] : memref<2x45xf32, #tpu.memory_space<vmem>>, vector<2x45xf32>
    %c0_1 = arith.constant 0 : index
    %c0_2 = arith.constant 0 : index
    %1 = vector.load %arg2[%c0_1, %c0_2] : memref<8x45xf32, #tpu.memory_space<vmem>>, vector<8x45xf32>
    %cst = arith.constant dense<0.000000e+00> : vector<8x2xf32>
    %2 = tpu.matmul %1, %0, %cst {dimension_numbers = #tpu.dot_dimension_numbers<[1], [1], [0], [0], [0, 0, 1, 0], [], []>} : vector<8x45xf32>, vector<2x45xf32>, vector<8x2xf32> -> vector<8x2xf32>
    %c0_3 = arith.constant 0 : index
    %c0_4 = arith.constant 0 : index
    %3 = vector.load %arg3[%c0_3, %c0_4] : memref<8x1xf32, #tpu.memory_space<vmem>>, vector<8x1xf32>
    %4 = vector.broadcast %3 : vector<8x1xf32> to vector<8x2xf32>
    %5 = arith.addf %2, %4 : vector<8x2xf32>
    %cst_5 = arith.constant 0.000000e+00 : f32
    %6 = vector.broadcast %cst_5 : f32 to vector<8x2xf32>
    %7 = arith.maximumf %5, %6 : vector<8x2xf32>
    %c0_6 = arith.constant 0 : index
    %c0_7 = arith.constant 0 : index
    %8 = vector.load %arg4[%c0_6, %c0_7] : memref<8x8xf32, #tpu.memory_space<vmem>>, vector<8x8xf32>
    %9 = vector.extract_strided_slice %7 {offsets = [0, 0], sizes = [1, 2], strides = [1, 1]} : vector<8x2xf32> to vector<1x2xf32>
    %10 = vector.extract_strided_slice %8 {offsets = [0, 0], sizes = [8, 1], strides = [1, 1]} : vector<8x8xf32> to vector<8x1xf32>
    %11 = vector.broadcast %9 : vector<1x2xf32> to vector<8x2xf32>
    %12 = vector.broadcast %10 : vector<8x1xf32> to vector<8x2xf32>
    %13 = arith.mulf %11, %12 : vector<8x2xf32>
    %14 = vector.extract_strided_slice %7 {offsets = [1, 0], sizes = [1, 2], strides = [1, 1]} : vector<8x2xf32> to vector<1x2xf32>
    %15 = vector.extract_strided_slice %8 {offsets = [0, 1], sizes = [8, 1], strides = [1, 1]} : vector<8x8xf32> to vector<8x1xf32>
    %16 = vector.broadcast %14 : vector<1x2xf32> to vector<8x2xf32>
    %17 = vector.broadcast %15 : vector<8x1xf32> to vector<8x2xf32>
    %18 = arith.mulf %16, %17 : vector<8x2xf32>
    %19 = arith.addf %13, %18 : vector<8x2xf32>
    %20 = vector.extract_strided_slice %7 {offsets = [2, 0], sizes = [1, 2], strides = [1, 1]} : vector<8x2xf32> to vector<1x2xf32>
    %21 = vector.extract_strided_slice %8 {offsets = [0, 2], sizes = [8, 1], strides = [1, 1]} : vector<8x8xf32> to vector<8x1xf32>
    %22 = vector.broadcast %20 : vector<1x2xf32> to vector<8x2xf32>
    %23 = vector.broadcast %21 : vector<8x1xf32> to vector<8x2xf32>
    %24 = arith.mulf %22, %23 : vector<8x2xf32>
    %25 = arith.addf %19, %24 : vector<8x2xf32>
    %26 = vector.extract_strided_slice %7 {offsets = [3, 0], sizes = [1, 2], strides = [1, 1]} : vector<8x2xf32> to vector<1x2xf32>
    %27 = vector.extract_strided_slice %8 {offsets = [0, 3], sizes = [8, 1], strides = [1, 1]} : vector<8x8xf32> to vector<8x1xf32>
    %28 = vector.broadcast %26 : vector<1x2xf32> to vector<8x2xf32>
    %29 = vector.broadcast %27 : vector<8x1xf32> to vector<8x2xf32>
    %30 = arith.mulf %28, %29 : vector<8x2xf32>
    %31 = arith.addf %25, %30 : vector<8x2xf32>
    %32 = vector.extract_strided_slice %7 {offsets = [4, 0], sizes = [1, 2], strides = [1, 1]} : vector<8x2xf32> to vector<1x2xf32>
    %33 = vector.extract_strided_slice %8 {offsets = [0, 4], sizes = [8, 1], strides = [1, 1]} : vector<8x8xf32> to vector<8x1xf32>
    %34 = vector.broadcast %32 : vector<1x2xf32> to vector<8x2xf32>
    %35 = vector.broadcast %33 : vector<8x1xf32> to vector<8x2xf32>
    %36 = arith.mulf %34, %35 : vector<8x2xf32>
    %37 = arith.addf %31, %36 : vector<8x2xf32>
    %38 = vector.extract_strided_slice %7 {offsets = [5, 0], sizes = [1, 2], strides = [1, 1]} : vector<8x2xf32> to vector<1x2xf32>
    %39 = vector.extract_strided_slice %8 {offsets = [0, 5], sizes = [8, 1], strides = [1, 1]} : vector<8x8xf32> to vector<8x1xf32>
    %40 = vector.broadcast %38 : vector<1x2xf32> to vector<8x2xf32>
    %41 = vector.broadcast %39 : vector<8x1xf32> to vector<8x2xf32>
    %42 = arith.mulf %40, %41 : vector<8x2xf32>
    %43 = arith.addf %37, %42 : vector<8x2xf32>
    %44 = vector.extract_strided_slice %7 {offsets = [6, 0], sizes = [1, 2], strides = [1, 1]} : vector<8x2xf32> to vector<1x2xf32>
    %45 = vector.extract_strided_slice %8 {offsets = [0, 6], sizes = [8, 1], strides = [1, 1]} : vector<8x8xf32> to vector<8x1xf32>
    %46 = vector.broadcast %44 : vector<1x2xf32> to vector<8x2xf32>
    %47 = vector.broadcast %45 : vector<8x1xf32> to vector<8x2xf32>
    %48 = arith.mulf %46, %47 : vector<8x2xf32>
    %49 = arith.addf %43, %48 : vector<8x2xf32>
    %50 = vector.extract_strided_slice %7 {offsets = [7, 0], sizes = [1, 2], strides = [1, 1]} : vector<8x2xf32> to vector<1x2xf32>
    %51 = vector.extract_strided_slice %8 {offsets = [0, 7], sizes = [8, 1], strides = [1, 1]} : vector<8x8xf32> to vector<8x1xf32>
    %52 = vector.broadcast %50 : vector<1x2xf32> to vector<8x2xf32>
    %53 = vector.broadcast %51 : vector<8x1xf32> to vector<8x2xf32>
    %54 = arith.mulf %52, %53 : vector<8x2xf32>
    %55 = arith.addf %49, %54 : vector<8x2xf32>
    %c0_8 = arith.constant 0 : index
    %c0_9 = arith.constant 0 : index
    %56 = vector.load %arg5[%c0_8, %c0_9] : memref<8x1xf32, #tpu.memory_space<vmem>>, vector<8x1xf32>
    %57 = vector.broadcast %56 : vector<8x1xf32> to vector<8x2xf32>
    %58 = arith.addf %55, %57 : vector<8x2xf32>
    %cst_10 = arith.constant 0.000000e+00 : f32
    %59 = vector.broadcast %cst_10 : f32 to vector<8x2xf32>
    %60 = arith.maximumf %58, %59 : vector<8x2xf32>
    %c0_11 = arith.constant 0 : index
    %c0_12 = arith.constant 0 : index
    %61 = vector.load %arg6[%c0_11, %c0_12] : memref<8x1xf32, #tpu.memory_space<vmem>>, vector<8x1xf32>
    %62 = vector.broadcast %61 : vector<8x1xf32> to vector<8x2xf32>
    %63 = arith.mulf %60, %62 : vector<8x2xf32>
    %cst_13 = arith.constant dense<0.000000e+00> : vector<2xf32>
    %64 = vector.multi_reduction <add>, %63, %cst_13 [0] : vector<8x2xf32> to vector<2xf32>
    %65 = vector.shape_cast %64 : vector<2xf32> to vector<1x2xf32>
    %c0_14 = arith.constant 0 : index
    %66 = memref.load %arg7[%c0_14] : memref<1xf32, #tpu.memory_space<smem>>
    %67 = vector.broadcast %66 : f32 to vector<1x2xf32>
    %68 = arith.addf %65, %67 : vector<1x2xf32>
    %c0_15 = arith.constant 0 : index
    %c0_16 = arith.constant 0 : index
    %69 = vector.load %arg8[%c0_15, %c0_16] : memref<1x2xf32, #tpu.memory_space<vmem>>, vector<1x2xf32>
    tpu.vector_store %arg8[%c0_15, %c0_16], %68 {strides = array<i32>} : memref<1x2xf32, #tpu.memory_space<vmem>>, vector<1x2xf32>,
    return
  }
  func.func @transform_0(%arg0: i32) -> (i32, i32) {
    %c0_i32 = arith.constant 0 : i32
    %c0_i32_0 = arith.constant 0 : i32
    return %arg0, %c0_i32 : i32, i32
  }
  func.func @transform_1(%arg0: i32) -> (i32, i32) {
    %c0_i32 = arith.constant 0 : i32
    %c0_i32_0 = arith.constant 0 : i32
    %c0_i32_1 = arith.constant 0 : i32
    return %c0_i32, %c0_i32_0 : i32, i32
  }
  func.func @transform_2(%arg0: i32) -> (i32, i32) {
    %c0_i32 = arith.constant 0 : i32
    %c0_i32_0 = arith.constant 0 : i32
    %c0_i32_1 = arith.constant 0 : i32
    return %c0_i32, %c0_i32_0 : i32, i32
  }
  func.func @transform_3(%arg0: i32) -> (i32, i32) {
    %c0_i32 = arith.constant 0 : i32
    %c0_i32_0 = arith.constant 0 : i32
    %c0_i32_1 = arith.constant 0 : i32
    return %c0_i32, %c0_i32_0 : i32, i32
  }
  func.func @transform_4(%arg0: i32) -> (i32, i32) {
    %c0_i32 = arith.constant 0 : i32
    %c0_i32_0 = arith.constant 0 : i32
    %c0_i32_1 = arith.constant 0 : i32
    return %c0_i32, %c0_i32_0 : i32, i32
  }
  func.func @transform_5(%arg0: i32) -> (i32, i32) {
    %c0_i32 = arith.constant 0 : i32
    %c0_i32_0 = arith.constant 0 : i32
    %c0_i32_1 = arith.constant 0 : i32
    return %c0_i32, %c0_i32_0 : i32, i32
  }
  func.func @transform_6(%arg0: i32) -> i32 {
    %c0_i32 = arith.constant 0 : i32
    %c0_i32_0 = arith.constant 0 : i32
    return %c0_i32 : i32
  }
  func.func @transform_7(%arg0: i32) -> (i32, i32) {
    %c0_i32 = arith.constant 0 : i32
    %c0_i32_0 = arith.constant 0 : i32
    return %c0_i32, %arg0 : i32, i32
  }
}

</mosaic_0001>

<llo_original>
// kernel: tpu_custom_call.1
$region0: #{tpu_custom_call.1}
  #allocation0 [shape = 'u32[]', space=smem, size = 0x4, offset = 0x4, fixed_abs, tag = 'smem constant byte address 0x4 - core index']
  #allocation1 [shape = 'u32[144,128]{1,0:T(1,128)}', space=vmem, size = 0x12000, scoped, tag = 'internal scratch']
  #allocation2 [shape = 'f32[1]{0:T(128)S(6)}', space=smem, size = 0x200, scoped, tag = 'scoped memory for tpu_custom_call.1']
  %s0 = inlined_call_operand.vmem [shape: f32[2,45], index: 0, kind: input, shape index: {}]
  %s1 = inlined_call_operand.vmem [shape: f32[8,45], index: 1, kind: input, shape index: {}]
  %s2 = inlined_call_operand.vmem [shape: f32[8,1], index: 2, kind: input, shape index: {}]
  %s3 = inlined_call_operand.vmem [shape: f32[8,8], index: 3, kind: input, shape index: {}]
  %s4 = inlined_call_operand.vmem [shape: f32[8,1], index: 4, kind: input, shape index: {}]
  %s5 = inlined_call_operand.vmem [shape: f32[8,1], index: 5, kind: input, shape index: {}]
  %s6 = inlined_call_operand.<no memory space> [shape: f32[1], index: 6, kind: input, shape index: {}]
  %s7 = inlined_call_operand.hbm [shape: f32[1,2], index: 7, kind: output, shape index: {}]
  %s8 = sld [smem:[#allocation0]]
  $region38: #{tpu_custom_call.1} parent=0
    _
  %s10 = ssub.s32 1, %s8
  %s11 = scalar_select 0, %s10, %s8
  %12 = sst [smem:[#allocation2]] %s6
  $region1: #{tpu_custom_call.1} parent=0
    #allocation3 [shape = 'u8[512]{0}', space=vmem, size = 0x400, scoped, tag = 'output window, operand 0, single buffered']
    #allocation4 [shape = 's32[1]{0}', space=sflag, size = 0x4, scoped, tag = 'scoped memory for tpu_custom_call.1']
    %13 = vsyncpa [#allocation4], 0
    // Predicated region
    $region2: #{tpu_custom_call.1} parent=1 // pred_check
      _
    $region3: #{tpu_custom_call.1} parent=1 // pred_check_branch
      %15 = sbr.rel (0) target = $region5
    $region4: #{tpu_custom_call.1} parent=1 // pred_region
      _
    $region5: #{tpu_custom_call.1} parent=1 // pred_fallthru
      _
    // Predicated region
    $region6: #{tpu_custom_call.1} parent=1 // pred_check
      _
    $region7: #{tpu_custom_call.1} parent=1 // pred_check_branch
      %17 = sbr.rel (0) target = $region9
    $region8: #{tpu_custom_call.1} parent=1 // pred_region
      _
    $region9: #{tpu_custom_call.1} parent=1 // pred_fallthru
      _
    // Predicated region
    $region10: #{tpu_custom_call.1} parent=1 // pred_check
      _
    $region11: #{tpu_custom_call.1} parent=1 // pred_check_branch
      %19 = sbr.rel (0) target = $region13
    $region12: #{tpu_custom_call.1} parent=1 // pred_region
      _
    $region13: #{tpu_custom_call.1} parent=1 // pred_fallthru
      _
    // Predicated region
    $region14: #{tpu_custom_call.1} parent=1 // pred_check
      _
    $region15: #{tpu_custom_call.1} parent=1 // pred_check_branch
      %21 = sbr.rel (0) target = $region17
    $region16: #{tpu_custom_call.1} parent=1 // pred_region
      _
    $region17: #{tpu_custom_call.1} parent=1 // pred_fallthru
      _
    // Predicated region
    $region18: #{tpu_custom_call.1} parent=1 // pred_check
      _
    $region19: #{tpu_custom_call.1} parent=1 // pred_check_branch
      %23 = sbr.rel (0) target = $region21
    $region20: #{tpu_custom_call.1} parent=1 // pred_region
      _
    $region21: #{tpu_custom_call.1} parent=1 // pred_fallthru
      _
    // Predicated region
    $region22: #{tpu_custom_call.1} parent=1 // pred_check
      _
    $region23: #{tpu_custom_call.1} parent=1 // pred_check_branch
      %25 = sbr.rel (0) target = $region25
    $region24: #{tpu_custom_call.1} parent=1 // pred_region
      _
    $region25: #{tpu_custom_call.1} parent=1 // pred_fallthru
      _
    // Predicated region
    $region26: #{tpu_custom_call.1} parent=1 // pred_check
      _
    $region27: #{tpu_custom_call.1} parent=1 // pred_check_branch
      %27 = sbr.rel (0) target = $region29
    $region28: #{tpu_custom_call.1} parent=1 // pred_region
      _
    $region29: #{tpu_custom_call.1} parent=1 // pred_fallthru
      _
    %v28 = vld [vmem:[%s0] sm:$0x3]
    %v29 = vld [vmem:[%s1] sm:$0xff]
    %v30 = vld [vmem:[%s2] sm:$0xff]
    %32 = vset.pattern.permute.xlu0 0
    %33 = vperm.xlu0 %32, %v30
    %v34 = vpop.permute.xlu0 %33
    %vm36 = vcmask 367616
    %v38 = vsel %vm36, %v29, 0
    %v41 = vsel %vm36, %v28, 0
    %43 = vmatprep.subr.mxu0 0.0
    %44 = vmatpush1.xpose.msra.mxu0 %v41
    %45 = vmatprep.subr.mxu0 0.0
    %46 = vmatpush1.xpose.msra.mxu0 0.0
    %47 = vmatprep.subr.mxu0 0.0
    %48 = vmatpush1.xpose.msra.mxu0 0.0
    %49 = vmatprep.subr.mxu0 0.0
    %50 = vmatpush1.xpose.msra.mxu0 0.0
    %51 = vmatprep.subr.mxu0 0.0
    %52 = vmatpush1.xpose.msra.mxu0 0.0
    %53 = vmatprep.subr.mxu0 0.0
    %54 = vmatpush1.xpose.msra.mxu0 0.0
    %55 = vmatprep.subr.mxu0 0.0
    %56 = vmatpush1.xpose.msra.mxu0 0.0
    %57 = vmatprep.subr.mxu0 0.0
    %58 = vmatpush1.xpose.msra.mxu0 0.0
    %59 = vmatprep.subr.mxu0 0.0
    %60 = vmatpush1.xpose.msra.mxu0 0.0
    %61 = vmatprep.subr.mxu0 0.0
    %62 = vmatpush1.xpose.msra.mxu0 0.0
    %63 = vmatprep.subr.mxu0 0.0
    %64 = vmatpush1.xpose.msra.mxu0 0.0
    %65 = vmatprep.subr.mxu0 0.0
    %66 = vmatpush1.xpose.msra.mxu0 0.0
    %67 = vmatprep.subr.mxu0 0.0
    %68 = vmatpush1.xpose.msra.mxu0 0.0
    %69 = vmatprep.subr.mxu0 0.0
    %70 = vmatpush1.xpose.msra.mxu0 0.0
    %71 = vmatprep.subr.mxu0 0.0
    %72 = vmatpush1.xpose.msra.mxu0 0.0
    %73 = vmatprep.subr.mxu0 0.0
    %74 = vmatpush1.xpose.msra.mxu0 0.0
    %75 = vmatprep.subr.mxu0 0.0
    %76 = vmatpush1.xpose.msra.mxu0 0.0
    %77 = vmatprep.subr.mxu0 0.0
    %78 = vmatpush1.xpose.msra.mxu0 0.0
    %79 = vmatprep.subr.mxu0 0.0
    %80 = vmatpush1.xpose.msra.mxu0 0.0
    %81 = vmatprep.subr.mxu0 0.0
    %82 = vmatpush1.xpose.msra.mxu0 0.0
    %83 = vmatprep.subr.mxu0 0.0
    %84 = vmatpush1.xpose.msra.mxu0 0.0
    %85 = vmatprep.subr.mxu0 0.0
    %86 = vmatpush1.xpose.msra.mxu0 0.0
    %87 = vmatprep.subr.mxu0 0.0
    %88 = vmatpush1.xpose.msra.mxu0 0.0
    %89 = vmatprep.subr.mxu0 0.0
    %90 = vmatpush1.xpose.msra.mxu0 0.0
    %91 = vmatprep.subr.mxu0 0.0
    %92 = vmatpush1.xpose.msra.mxu0 0.0
    %93 = vmatprep.subr.mxu0 0.0
    %94 = vmatpush1.xpose.msra.mxu0 0.0
    %95 = vmatprep.subr.mxu0 0.0
    %96 = vmatpush1.xpose.msra.mxu0 0.0
    %97 = vmatprep.subr.mxu0 0.0
    %98 = vmatpush1.xpose.msra.mxu0 0.0
    %99 = vmatprep.subr.mxu0 0.0
    %100 = vmatpush1.xpose.msra.mxu0 0.0
    %101 = vmatprep.subr.mxu0 0.0
    %102 = vmatpush1.xpose.msra.mxu0 0.0
    %103 = vmatprep.subr.mxu0 0.0
    %104 = vmatpush1.xpose.msra.mxu0 0.0
    %105 = vmatprep.subr.mxu0 0.0
    %106 = vmatpush1.xpose.msra.mxu0 0.0
    %107 = vmatprep.mubr.f32.mxu0 0.0
    %108 = vmatmul.mubr.f32.gmra.mrb[0].mxu0 %v38
    %v109 = vpop.f32.mrb[0].mxu0
    %v110 = vadd.f32 %v34, %v109
    %v111 = vpop.f32.mrb[0].mxu0
    %112 = vdwg.mxu0
    %v113 = vmax.f32 %v110, 0.0
    %v114 = vld [vmem:[%s3] sm:$0xff]
    %v115 = vlaneseq
    %v116 = vshrl.u32 %v115, 7
    %v117 = vsub.s32 0, %v116
    %v118 = vrot.slane %v113, %v117
    %120 = vset.pattern.permute.xlu0 0
    %121 = vperm.xlu0 %120, %v114
    %v122 = vpop.permute.xlu0 %121
    %v124 = vmul.f32 %v118, %v122
    %v125 = vlaneseq
    %v126 = vshrl.u32 %v125, 7
    %v127 = vsub.s32 1, %v126
    %v128 = vrot.slane %v113, %v127
    %129 = vset.pattern.permute.xlu0 1
    %130 = vperm.xlu0 %129, %v114
    %v131 = vpop.permute.xlu0 %130
    %v133 = vmul.f32 %v128, %v131
    %v134 = vadd.f32 %v124, %v133
    %v135 = vlaneseq
    %v136 = vshrl.u32 %v135, 7
    %v137 = vsub.s32 2, %v136
    %v138 = vrot.slane %v113, %v137
    %139 = vset.pattern.permute.xlu0 2
    %140 = vperm.xlu0 %139, %v114
    %v141 = vpop.permute.xlu0 %140
    %v143 = vmul.f32 %v138, %v141
    %v144 = vadd.f32 %v134, %v143
    %v145 = vlaneseq
    %v146 = vshrl.u32 %v145, 7
    %v147 = vsub.s32 3, %v146
    %v148 = vrot.slane %v113, %v147
    %149 = vset.pattern.permute.xlu0 3
    %150 = vperm.xlu0 %149, %v114
    %v151 = vpop.permute.xlu0 %150
    %v153 = vmul.f32 %v148, %v151
    %v154 = vadd.f32 %v144, %v153
    %v155 = vlaneseq
    %v156 = vshrl.u32 %v155, 7
    %v157 = vsub.s32 4, %v156
    %v158 = vrot.slane %v113, %v157
    %159 = vset.pattern.permute.xlu0 4
    %160 = vperm.xlu0 %159, %v114
    %v161 = vpop.permute.xlu0 %160
    %v163 = vmul.f32 %v158, %v161
    %v164 = vadd.f32 %v154, %v163
    %v165 = vlaneseq
    %v166 = vshrl.u32 %v165, 7
    %v167 = vsub.s32 5, %v166
    %v168 = vrot.slane %v113, %v167
    %169 = vset.pattern.permute.xlu0 5
    %170 = vperm.xlu0 %169, %v114
    %v171 = vpop.permute.xlu0 %170
    %v173 = vmul.f32 %v168, %v171
    %v174 = vadd.f32 %v164, %v173
    %v175 = vlaneseq
    %v176 = vshrl.u32 %v175, 7
    %v177 = vsub.s32 6, %v176
    %v178 = vrot.slane %v113, %v177
    %179 = vset.pattern.permute.xlu0 6
    %180 = vperm.xlu0 %179, %v114
    %v181 = vpop.permute.xlu0 %180
    %v183 = vmul.f32 %v178, %v181
    %v184 = vadd.f32 %v174, %v183
    %v185 = vlaneseq
    %v186 = vshrl.u32 %v185, 7
    %v187 = vsub.s32 7, %v186
    %v188 = vrot.slane %v113, %v187
    %189 = vset.pattern.permute.xlu0 7
    %190 = vperm.xlu0 %189, %v114
    %v191 = vpop.permute.xlu0 %190
    %v193 = vmul.f32 %v188, %v191
    %v194 = vadd.f32 %v184, %v193
    %v195 = vld [vmem:[%s4] sm:$0xff]
    %197 = vset.pattern.permute.xlu0 0
    %198 = vperm.xlu0 %197, %v195
    %v199 = vpop.permute.xlu0 %198
    %v201 = vadd.f32 %v194, %v199
    %v202 = vmax.f32 %v201, 0.0
    %v203 = vld [vmem:[%s5] sm:$0xff]
    %205 = vset.pattern.permute.xlu0 0
    %206 = vperm.xlu0 %205, %v203
    %v207 = vpop.permute.xlu0 %206
    %v209 = vmul.f32 %v202, %v207
    %vm210 = vcmask 15360
    %v211 = vsel %vm210, %v209, 0.0
    %v212 = vrot.slane %v211, 4
    %v213 = vadd.f32 %v211, %v212
    %v214 = vrot.slane %v213, 2
    %v215 = vadd.f32 %v213, %v214
    %v216 = vrot.slane %v215, 1
    %v217 = vadd.f32 %v215, %v216
    %s218 = sld [smem:[#allocation2]]
    %v219 = vstv %s218
    %v220 = vadd.f32 %v217, %v219
    %vm221 = vcmask 8192
    %222 = vst.msk [vmem:[#allocation3] sm:$0x1] %vm221, %v220
    // Predicated region
    $region30: #{tpu_custom_call.1} parent=1 // pred_check
      _
    $region31: #{tpu_custom_call.1} parent=1 // pred_check_branch
      %224 = sbr.rel (0) target = $region33
    $region32: #{tpu_custom_call.1} parent=1 // pred_region
      %s226 = ssub.s32 16, 16
      %227 = vsyncadd [#allocation4], %s226
      %s229 = sshll.u32 [#allocation3], 4
      %s230 = int_to_ptr.vmem [resolvable:$true] %s229
      %232 = dma.vmem_to_hbm [thread:$0]  %s230, 16, %s7, [#allocation4]
    $region33: #{tpu_custom_call.1} parent=1 // pred_fallthru
      _
    // Predicated region
    $region34: #{tpu_custom_call.1} parent=1 // pred_check
      _
    $region35: #{tpu_custom_call.1} parent=1 // pred_check_branch
      %234 = sbr.rel (0) target = $region37
    $region36: #{tpu_custom_call.1} parent=1 // pred_region
      %235 = dma.done [#allocation4], 16
    $region37: #{tpu_custom_call.1} parent=1 // pred_fallthru
      _
    %236 = vsyncpa [#allocation4], 1

</llo_original>
